<compile_context>
chip_gen: v7x
topology: tpu7x:2x2x1
jax: 0.10.0
libtpu: 0.0.40
codegen_flags: <defaults>
</compile_context>

<pallas_src>
import jax
import jax.numpy as jnp
from jax.experimental import pallas as pl
from jax.experimental.pallas import tpu as pltpu

D = 4          # spacetime dimension
RS = 1.0       # Schwarzschild radius (deterministic "parameter" of the metric)
LANE = 128     # TPU lane width


# ----------------------------------------------------------------------------
# Pure-JAX reference (mirrors the PyTorch per-vector callable + torch.stack).
# ----------------------------------------------------------------------------
def metric_coordinate_function_ref(vec):
    # vec: (4,) -> (4, 4)
    r, th = vec[1], vec[2]
    f = 1.0 - RS / r
    diag = jnp.stack([-f, 1.0 / f, r * r, r * r * jnp.sin(th) ** 2])
    return jnp.diag(diag)


def space_time_metric_ref(x):
    return jax.vmap(metric_coordinate_function_ref)(x)   # (N, D, D)


# ----------------------------------------------------------------------------
# Pallas kernel.  One grid step handles `tile` batch rows, laid out lane-dense
# (batch on the lane axis):
#   x_ref : (D, tile)   coordinates (t, r, theta, phi) for `tile` rows
#   g_ref : (D, tile)   the four diagonal metric components for those rows
# Everything is elementwise on (1, tile) vectors; divides go to the EUP via
# pl.reciprocal and sin to the EUP as well, all fully hidden under the DMA.
# ----------------------------------------------------------------------------
def metric_diag_kernel(x_ref, g_ref):
    x = x_ref[...]                            # (4, tile) float32
    r = x[1:2, :]                             # (1, tile)
    th = x[2:3, :]                            # (1, tile)

    inv_r = pl.reciprocal(r, approx=False)    # EUP slot
    f = 1.0 - RS * inv_r
    g00 = -f
    g11 = pl.reciprocal(f, approx=False)      # exact: matches 1/f to ~1 ulp
    g22 = r * r
    s = jnp.sin(th)
    g33 = g22 * s * s

    # Single full, lane-dense, unmasked block store.
    g_ref[...] = jnp.concatenate([g00, g11, g22, g33], axis=0)   # (4, tile)


def _round_up(x, m):
    return ((x + m - 1) // m) * m


def space_time_metric(x, *, tile_n=32768):
    """x: (N, D) float32 coordinate batch -> (N, D, D) metric tensors."""
    N, Dd = x.shape
    assert Dd == D, f"expected D={D}, got {Dd}"

    # Batch on the lane axis for the kernel.  This transpose is tiny
    # (16 B/row) and allow_input_fusion lets XLA fold it into the operand.
    xt = x.T                                   # (D, N)

    if N <= LANE:
        # Block == full array: always legal, single step, no masking at all.
        tile = N
    else:
        cap = max(LANE, _round_up(tile_n, LANE))
        # >= 2 grid steps whenever N > 128 so both v7x TensorCores get work.
        tile = min(cap, _round_up(pl.cdiv(N, 2), LANE))
    grid = pl.cdiv(N, tile)                    # partial last block is fine

    g_t = pl.pallas_call(
        metric_diag_kernel,
        out_shape=jax.ShapeDtypeStruct((D, N), x.dtype),
        grid=(grid,),
        in_specs=[pl.BlockSpec((D, tile), lambda i: (0, i))],
        out_specs=pl.BlockSpec((D, tile), lambda i: (0, i)),
        compiler_params=pltpu.CompilerParams(
            dimension_semantics=("parallel",),     # shard steps across TCs
            allow_input_fusion=[True],             # fold x.T into operand DMA
            vmem_limit_bytes=32 * 1024 * 1024),
    )(xt)

    # Cheap, fusible epilogue: embed the diagonal into (N, D, D).  This is the
    # only pass that writes the 64 B/row output, and it reads just 16 B/row.
    diag = g_t.T                                                   # (N, D)
    eye = jnp.eye(D, dtype=diag.dtype)
    return diag[:, :, None] * eye[None, :, :]                      # (N, D, D)


def _make_coords(key, n):
    k_t, k_r, k_th, k_ph = jax.random.split(key, 4)
    # r well outside the horizon (r > RS), theta away from the poles.
    t = jax.random.uniform(k_t, (n, 1), minval=0.0, maxval=10.0)
    r = jax.random.uniform(k_r, (n, 1), minval=2.0, maxval=5.0)
    th = jax.random.uniform(k_th, (n, 1), minval=0.1, maxval=3.0)
    ph = jax.random.uniform(k_ph, (n, 1), minval=0.0, maxval=6.28)
    return jnp.concatenate([t, r, th, ph], axis=-1).astype(jnp.float32)


if __name__ == "__main__":
    key = jax.random.PRNGKey(0)
    key_small, key_big = jax.random.split(key)

    fwd = jax.jit(space_time_metric, static_argnames=("tile_n",))

    # Small batch (single full block path).
    N = 16
    x = _make_coords(key_small, N)                                 # (16, 4)
    out = jax.block_until_ready(fwd(x))
    ref = jax.block_until_ready(space_time_metric_ref(x))
    assert out.shape == (N, D, D), out.shape
    assert jnp.allclose(out, ref, atol=1e-5, rtol=1e-4), "mismatch (N=16)"

    # Non-aligned batch (exercises multi-step grid + partial last block).
    N2 = 300
    x2 = _make_coords(key_big, N2)                                 # (300, 4)
    out2 = jax.block_until_ready(fwd(x2))
    ref2 = jax.block_until_ready(space_time_metric_ref(x2))
    assert out2.shape == (N2, D, D), out2.shape
    assert jnp.allclose(out2, ref2, atol=1e-5, rtol=1e-4), "mismatch (N=300)"

    print("KERNEL_OK")
</pallas_src>

<mosaic_0001>
module attributes {stable_mosaic.version = 11 : i64} {
  func.func @metric_diag_kernel(%arg0: i32, %arg1: memref<4x16xf32, #tpu.memory_space<vmem>>, %arg2: memref<4x16xf32, #tpu.memory_space<vmem>>) attributes {dimension_semantics = [#tpu.dimension_semantics<parallel>], iteration_bounds = array<i64: 1>, scalar_prefetch = 0 : i64, scratch_operands = 0 : i64, tpu.core_type = #tpu.core_type<tc>, window_params = [{transform_indices = @transform_0, window_bounds = array<i64: 4, 16>}, {transform_indices = @transform_1, window_bounds = array<i64: 4, 16>}]} {
    %c0 = arith.constant 0 : index
    %c0_0 = arith.constant 0 : index
    %0 = vector.load %arg1[%c0, %c0_0] : memref<4x16xf32, #tpu.memory_space<vmem>>, vector<4x16xf32>
    %1 = vector.extract_strided_slice %0 {offsets = [1, 0], sizes = [1, 16], strides = [1, 1]} : vector<4x16xf32> to vector<1x16xf32>
    %2 = vector.extract_strided_slice %0 {offsets = [2, 0], sizes = [1, 16], strides = [1, 1]} : vector<4x16xf32> to vector<1x16xf32>
    %3 = tpu.reciprocal %1 : vector<1x16xf32> -> vector<1x16xf32>
    %cst = arith.constant 1.000000e+00 : f32
    %4 = vector.broadcast %cst : f32 to vector<1x16xf32>
    %5 = arith.mulf %4, %3 : vector<1x16xf32>
    %cst_1 = arith.constant 1.000000e+00 : f32
    %6 = vector.broadcast %cst_1 : f32 to vector<1x16xf32>
    %7 = arith.subf %6, %5 : vector<1x16xf32>
    %cst_2 = arith.constant 0.000000e+00 : f32
    %8 = vector.broadcast %cst_2 : f32 to vector<1x16xf32>
    %9 = arith.subf %8, %7 : vector<1x16xf32>
    %10 = tpu.reciprocal %7 : vector<1x16xf32> -> vector<1x16xf32>
    %11 = arith.mulf %1, %1 : vector<1x16xf32>
    %12 = math.sin %2 : vector<1x16xf32>
    %13 = arith.mulf %11, %12 : vector<1x16xf32>
    %14 = arith.mulf %13, %12 : vector<1x16xf32>
    %15 = tpu.concatenate %9, %10, %11, %14 in 0 : vector<1x16xf32>, vector<1x16xf32>, vector<1x16xf32>, vector<1x16xf32> -> vector<4x16xf32>
    %c0_3 = arith.constant 0 : index
    %c0_4 = arith.constant 0 : index
    %16 = vector.load %arg2[%c0_3, %c0_4] : memref<4x16xf32, #tpu.memory_space<vmem>>, vector<4x16xf32>
    tpu.vector_store %arg2[%c0_3, %c0_4], %15 {strides = array<i32>} : memref<4x16xf32, #tpu.memory_space<vmem>>, vector<4x16xf32>,
    return
  }
  func.func @transform_0(%arg0: i32) -> (i32, i32) {
    %c0_i32 = arith.constant 0 : i32
    %c0_i32_0 = arith.constant 0 : i32
    return %c0_i32, %arg0 : i32, i32
  }
  func.func @transform_1(%arg0: i32) -> (i32, i32) {
    %c0_i32 = arith.constant 0 : i32
    %c0_i32_0 = arith.constant 0 : i32
    return %c0_i32, %arg0 : i32, i32
  }
}

</mosaic_0001>

<llo_original>
// kernel: space_time_metric.2
$region0: #{space_time_metric.2}
  #allocation0 [shape = 'u32[]', space=smem, size = 0x4, offset = 0x4, fixed_abs, tag = 'smem constant byte address 0x4 - core index']
  #allocation1 [shape = 'u32[144,128]{1,0:T(1,128)}', space=vmem, size = 0x12000, scoped, tag = 'internal scratch']
  %s0 = inlined_call_operand.vmem [shape: f32[16,4], index: 0, kind: input, shape index: {}]
  %s1 = inlined_call_operand.vmem [shape: f32[4,16], index: 1, kind: output, shape index: {}]
  %s2 = sld [smem:[#allocation0]]
  $region14: #{space_time_metric.2} parent=0
    _
  %s4 = ssub.s32 1, %s2
  %s5 = scalar_select 0, %s4, %s2
  $region1: #{space_time_metric.2} parent=0
    #allocation2 [shape = 'u8[2048]{0}', space=vmem, size = 0x800, dematerialized = true, scoped, tag = 'FusionAdapter Buffer %fusion.1 = f32[4,16]{1,0:T(4,128)} fusion(%param_0.4), kind=kLoop, calls=%fused_computation.2.clone, metadata={op_name="jit(space_time_metric)/transpose" stack_frame_id=7}']
    // Predicated region
    $region2: #{space_time_metric.2} parent=1 // pred_check
      _
    $region3: #{space_time_metric.2} parent=1 // pred_check_branch
      %7 = sbr.rel (0) target = $region5
    $region4: #{space_time_metric.2} parent=1 // pred_region
      _
    $region5: #{space_time_metric.2} parent=1 // pred_fallthru
      _
    %v8 = vld [vmem:[%s0] sm:$0xf]
    %10 = vst [vmem:[#allocation2] sm:$0xf] %v8
    %v11 = vld [vmem:[#allocation2] sm:$0xf]
    %v12 = vrcp.pop %v11
    %v13 = vsub.f32 1.0, %v12
    %v14 = vsub.f32 0.0, %v13
    %v15 = vrcp.pop %v13
    %v16 = vmul.f32 %v11, %v11
    %v17 = vand.u32 2147483647, %v11
    %vm18 = vcmp.le.f32.partialorder %v17, 0.7853982
    %vm19 = vcmp.lt.s32.totalorder %v11, 0
    %v20 = vand.u32 %v11, 2139095040
    %v21 = vshrl.u32 %v20, 23
    %v22 = vsub.s32 %v21, 127
    %v23 = vand.u32 2147483647, %v11
    %v24 = vand.u32 %v23, 8388607
    %v25 = vor.u32 %v24, 8388608
    %v26 = vsub.s32 0, %v25
    %v27 = vadd.s32 %v22, 1
    %vm28 = vcmp.gt.s32.totalorder %v27, 0
    %v29 = vsel %vm28, %v27, 0
    %v30 = vshrl.u32 %v29, 5
    %v31 = vand.u32 %v29, 31
    %v32 = vsub.s32 32, %v31
    %v33 = vshrl.u32 683565275, %v32
    %v34 = vshll.u32 683565275, %v31
    %v35 = vshrl.u32 2475754826, %v32
    %v36 = vor.u32 %v34, %v35
    %v37 = vshll.u32 2475754826, %v31
    %v38 = vshrl.u32 2131351028, %v32
    %v39 = vor.u32 %v37, %v38
    %v40 = vshll.u32 2131351028, %v31
    %v41 = vshrl.u32 2102212464, %v32
    %v42 = vor.u32 %v40, %v41
    %v43 = vshll.u32 2102212464, %v31
    %v44 = vshrl.u32 920167782, %v32
    %v45 = vor.u32 %v43, %v44
    %v46 = vshll.u32 920167782, %v31
    %v47 = vshrl.u32 1326507024, %v32
    %v48 = vor.u32 %v46, %v47
    %vm49 = vcmp.lt.s32.totalorder %v30, 1
    %vm50 = vcmp.lt.s32.totalorder %v30, 2
    %vm51 = vcmp.lt.s32.totalorder %v30, 3
    %vm52 = vcmp.lt.s32.totalorder %v30, 4
    %v53 = vsel %vm49, %v33, %v36
    %v54 = vsel %vm52, %v42, 2102212464
    %v55 = vsel %vm51, %v39, %v54
    %v56 = vsel %vm50, %v53, %v55
    %v57 = vsel %vm49, %v36, %v39
    %v58 = vsel %vm52, %v45, 920167782
    %v59 = vsel %vm51, %v42, %v58
    %v60 = vsel %vm50, %v57, %v59
    %v61 = vsel %vm49, %v39, %v42
    %v62 = vsel %vm52, %v48, 1326507024
    %v63 = vsel %vm51, %v45, %v62
    %v64 = vsel %vm50, %v61, %v63
    %v65 = vshll.u32 %v25, 8
    %v66 = vmul.u32.u64.compose %v65, %v64
    %v67 = vextract.low.u32 %v66
    %v68 = vextract.high.u32 %v66
    %v69 = vmul.u32.u64.compose %v65, %v60
    %v70 = vextract.low.u32 %v69
    %v71 = vextract.high.u32 %v69
    %v72 = vmul.u32 %v65, %v56
    %v73 = vadd.s32 %v68, %v70
    %vm74 = vc.u32 %v68, %v70
    %v75 = vadd.s32 %v71, 1
    %v76 = vsel %vm74, %v75, %v71
    %v77 = vadd.s32 %v72, %v76
    %v78 = vadd.s32 %v77, 536870912
    %v79 = vshrl.u32 %v78, 30
    %v80 = vshll.u32 %v79, 30
    %v81 = vsub.s32 %v77, %v80
    %vm82 = vcmp.lt.s32.totalorder %v81, 0
    %v83 = vsub.s32 0, %v81
    %v84 = vsel %vm82, %v83, %v81
    %v85 = vclz %v84
    %v86 = vsub.s32 %v85, 2
    %vm87 = vcmp.gt.s32.totalorder 0, %v86
    %v88 = vsel %vm87, 0, %v86
    %v89 = vsub.s32 32, %v88
    %v90 = vshll.u32 %v81, %v88
    %v91 = vshrl.u32 %v73, %v89
    %v92 = vor.u32 %v90, %v91
    %v93 = vsub.s32 4294967266, %v88
    %v94 = vadd.s32 %v93, 127
    %v95 = vshll.u32 %v94, 23
    %v96 = vor.u32 4788187, %v95
    %v97 = vand.u32 2147483647, %v96
    %v99 = vcvt.s32.f32 %v92
    %v100 = vmul.f32 %v99, %v97
    %v101 = vxor.u32 %v100, 2147483648
    %v102 = vsel %vm19, %v101, %v100
    %v103 = vsub.s32 4, %v79
    %v104 = vsel %vm19, %v103, %v79
    %v105 = vsel %vm18, %v11, %v102
    %v106 = vsel %vm18, 0, %v104
    %v107 = vcosq.f32.pop %v105
    %v108 = vsinq.f32.pop %v105
    %vm109 = vweird.f32 %v11
    %v110 = vadd.s32 %v106, 3
    %v111 = vand.u32 %v110, 3
    %vm112 = vcmp.lt.s32.totalorder %v111, 2
    %vm113 = vcmp.eq.s32.totalorder %v111, 0
    %v114 = vxor.u32 %v108, 2147483648
    %v115 = vsel %vm113, %v107, %v114
    %vm116 = vcmp.eq.s32.totalorder %v111, 2
    %v117 = vxor.u32 %v107, 2147483648
    %v118 = vsel %vm116, %v117, %v108
    %v119 = vsel %vm112, %v115, %v118
    %v120 = vsel %vm109, nan, %v119
    %v122 = vrot.slane %v120, 1
    %v124 = vmul.f32 %v16, %v122
    %v125 = vmul.f32 %v124, %v122
    %v127 = vrot.slane %v14, 1
    %v130 = vrot.slane %v16, 7
    %v133 = vrot.slane %v125, 6
    %vm135 = vcmask 1040384
    %v136 = vsel %vm135, %v127, %v15
    %vm137 = vcmask 1041408
    %v138 = vsel %vm137, %v136, %v130
    %vm139 = vcmask 1042432
    %v140 = vsel %vm139, %v138, %v133
    %vm141 = vcmask 125952
    %142 = vst.msk [vmem:[%s1] sm:$0xf] %vm141, %v140
    // Predicated region
    $region6: #{space_time_metric.2} parent=1 // pred_check
      _
    $region7: #{space_time_metric.2} parent=1 // pred_check_branch
      %144 = sbr.rel (0) target = $region9
    $region8: #{space_time_metric.2} parent=1 // pred_region
      _
    $region9: #{space_time_metric.2} parent=1 // pred_fallthru
      _
    // Predicated region
    $region10: #{space_time_metric.2} parent=1 // pred_check
      _
    $region11: #{space_time_metric.2} parent=1 // pred_check_branch
      %146 = sbr.rel (0) target = $region13
    $region12: #{space_time_metric.2} parent=1 // pred_region
      _
    $region13: #{space_time_metric.2} parent=1 // pred_fallthru
      _

</llo_original>
